<compile_context>
chip_gen: v5e
topology: v5e:2x2
jax: 0.10.0
libtpu: 0.0.40
codegen_flags: <defaults>
</compile_context>

<pallas_src>
import functools

import jax
import jax.numpy as jnp
from jax.experimental import pallas as pl
from jax.experimental.pallas import tpu as pltpu

NN_LAYER_1 = 100
NN_LAYER_2 = 100

_HID_PAD = 128   # hidden dims padded to a full lane width
_OUT_PAD = 128   # output dim padded to a full lane width (sliced in wrapper)


def _round_up(n, m):
    return ((n + m - 1) // m) * m


def _mlp_kernel(x_ref, w1_ref, b1_ref, w2_ref, b2_ref, w3_ref, b3_ref, o_ref):
    """Fused 3-layer MLP on one (TB, state_dim) batch tile."""
    wdt = w1_ref.dtype  # matmul operand dtype (f32 or bf16); accumulation is f32
    # fc1 + relu
    h1 = jnp.dot(x_ref[...].astype(wdt), w1_ref[...],
                 preferred_element_type=jnp.float32)
    h1 = jnp.maximum(h1 + b1_ref[...], 0.0)
    # fc2 + relu
    h2 = jnp.dot(h1.astype(wdt), w2_ref[...],
                 preferred_element_type=jnp.float32)
    h2 = jnp.maximum(h2 + b2_ref[...], 0.0)
    # fc_mu + tanh
    mu = jnp.dot(h2.astype(wdt), w3_ref[...],
                 preferred_element_type=jnp.float32)
    o_ref[...] = jnp.tanh(mu + b3_ref[...]).astype(o_ref.dtype)


def _pad_params(params, matmul_dtype):
    """Zero-pad hidden dims to 128 and output dim to 128 (exact semantics)."""
    w1, b1 = params["w1"], params["b1"]
    w2, b2 = params["w2"], params["b2"]
    w3, b3 = params["w3"], params["b3"]
    h1 = w1.shape[1]
    h2 = w2.shape[1]
    act_dim = w3.shape[1]

    w1p = jnp.pad(w1, ((0, 0), (0, _HID_PAD - h1))).astype(matmul_dtype)
    b1p = jnp.pad(b1, ((0, 0), (0, _HID_PAD - h1)))                       # f32
    w2p = jnp.pad(w2, ((0, _HID_PAD - h1), (0, _HID_PAD - h2))).astype(matmul_dtype)
    b2p = jnp.pad(b2, ((0, 0), (0, _HID_PAD - h2)))                       # f32
    w3p = jnp.pad(w3, ((0, _HID_PAD - h2), (0, _OUT_PAD - act_dim))).astype(matmul_dtype)
    b3p = jnp.pad(b3, ((0, 0), (0, _OUT_PAD - act_dim)))                  # f32
    return w1p, b1p, w2p, b2p, w3p, b3p


@functools.partial(jax.jit, static_argnames=("block_b", "use_bf16_matmul"))
def double_policy_net_forward(x, params, *, block_b=1024, use_bf16_matmul=False):
    """x: [B, state_dim] float32. params: dict of w1,b1,w2,b2,w3,b3 ([in,out] weights)."""
    B, state_dim = x.shape
    act_dim = params["w3"].shape[1]

    matmul_dtype = jnp.bfloat16 if use_bf16_matmul else jnp.float32
    w1, b1, w2, b2, w3, b3 = _pad_params(params, matmul_dtype)

    # Batch tiling: TB rows per grid step (sublane-aligned), pad B up to a
    # multiple of TB with zero rows that are sliced away afterwards.
    TB = min(block_b, _round_up(B, 8))
    B_pad = _round_up(B, TB)
    if B_pad != B:
        x = jnp.pad(x, ((0, B_pad - B), (0, 0)))
    x = x.astype(matmul_dtype)

    grid = (B_pad // TB,)

    # Weights/biases: full-shape blocks with constant index maps -> DMA'd once,
    # kept resident in VMEM across all batch tiles.
    resident = lambda arr: pl.BlockSpec(arr.shape, lambda i: (0, 0))

    out_padded = pl.pallas_call(
        _mlp_kernel,
        out_shape=jax.ShapeDtypeStruct((B_pad, _OUT_PAD), jnp.float32),
        grid=grid,
        in_specs=[
            pl.BlockSpec((TB, state_dim), lambda i: (i, 0)),  # x: tiled over batch
            resident(w1), resident(b1),
            resident(w2), resident(b2),
            resident(w3), resident(b3),
        ],
        out_specs=pl.BlockSpec((TB, _OUT_PAD), lambda i: (i, 0)),
        compiler_params=pltpu.CompilerParams(
            dimension_semantics=("parallel",),   # shard batch tiles across TCs (v7x)
            vmem_limit_bytes=64 * 1024 * 1024,
        ),
    )(x, w1, b1, w2, b2, w3, b3)

    # Drop batch padding and lane padding of the output.
    return out_padded[:B, :act_dim]


def init_params(key, state_dim, act_dim):
    """Deterministic init mimicking nn.Linear's U(-1/sqrt(fan_in), 1/sqrt(fan_in)).

    Weights are kept as [in, out] (transpose of PyTorch's [out, in]) for the
    kernel layout; biases are [1, out] for 2D broadcast.
    """
    def linear(key, fan_in, fan_out):
        kw, kb = jax.random.split(key)
        bound = 1.0 / jnp.sqrt(jnp.float32(fan_in))
        w = jax.random.uniform(kw, (fan_in, fan_out), jnp.float32, -bound, bound)
        b = jax.random.uniform(kb, (1, fan_out), jnp.float32, -bound, bound)
        return w, b

    k1, k2, k3 = jax.random.split(key, 3)
    w1, b1 = linear(k1, state_dim, NN_LAYER_1)
    w2, b2 = linear(k2, NN_LAYER_1, NN_LAYER_2)
    w3, b3 = linear(k3, NN_LAYER_2, act_dim)
    return {"w1": w1, "b1": b1, "w2": w2, "b2": b2, "w3": w3, "b3": b3}


def reference_forward(x, p):
    h1 = jnp.maximum(x @ p["w1"] + p["b1"], 0.0)
    h2 = jnp.maximum(h1 @ p["w2"] + p["b2"], 0.0)
    return jnp.tanh(h2 @ p["w3"] + p["b3"])


if __name__ == "__main__":
    key = jax.random.PRNGKey(0)
    k_params, k_x1, k_x2 = jax.random.split(key, 3)

    state_dim = 16
    act_dim = 2
    params = init_params(k_params, state_dim, act_dim)

    # --- small batch, single grid step ---
    batch = 8
    x = jax.random.normal(k_x1, (batch, state_dim), jnp.float32)
    mu = jax.block_until_ready(double_policy_net_forward(x, params))
    ref = reference_forward(x, params)
    assert mu.shape == (batch, act_dim)
    assert jnp.allclose(mu, ref, atol=1e-5, rtol=1e-5)

    # --- non-multiple batch + multi-step grid (exercises padding & pipelining) ---
    batch2 = 300
    x2 = jax.random.normal(k_x2, (batch2, state_dim), jnp.float32)
    mu2 = jax.block_until_ready(
        double_policy_net_forward(x2, params, block_b=128))
    ref2 = reference_forward(x2, params)
    assert mu2.shape == (batch2, act_dim)
    assert jnp.allclose(mu2, ref2, atol=1e-5, rtol=1e-5)

    # --- bf16 matmul / f32 accumulation path (v6e/v7x fast path); smoke test ---
    mu3 = jax.block_until_ready(
        double_policy_net_forward(x2, params, block_b=128, use_bf16_matmul=True))
    assert mu3.shape == (batch2, act_dim)
    assert bool(jnp.all(jnp.isfinite(mu3)))

    print("KERNEL_OK")
</pallas_src>

<mosaic_0001>
module attributes {stable_mosaic.version = 11 : i64} {
  func.func @_mlp_kernel(%arg0: i32, %arg1: memref<8x16xf32, #tpu.memory_space<vmem>>, %arg2: memref<16x128xf32, #tpu.memory_space<vmem>>, %arg3: memref<1x128xf32, #tpu.memory_space<vmem>>, %arg4: memref<128x128xf32, #tpu.memory_space<vmem>>, %arg5: memref<1x128xf32, #tpu.memory_space<vmem>>, %arg6: memref<128x128xf32, #tpu.memory_space<vmem>>, %arg7: memref<1x128xf32, #tpu.memory_space<vmem>>, %arg8: memref<8x128xf32, #tpu.memory_space<vmem>>) attributes {dimension_semantics = [#tpu.dimension_semantics<parallel>], iteration_bounds = array<i64: 1>, scalar_prefetch = 0 : i64, scratch_operands = 0 : i64, tpu.core_type = #tpu.core_type<tc>, window_params = [{transform_indices = @transform_0, window_bounds = array<i64: 8, 16>}, {pipeline_mode = #tpu.pipeline_mode<synchronous>, transform_indices = @transform_1, window_bounds = array<i64: 16, 128>}, {pipeline_mode = #tpu.pipeline_mode<synchronous>, transform_indices = @transform_2, window_bounds = array<i64: 1, 128>}, {pipeline_mode = #tpu.pipeline_mode<synchronous>, transform_indices = @transform_3, window_bounds = array<i64: 128, 128>}, {pipeline_mode = #tpu.pipeline_mode<synchronous>, transform_indices = @transform_4, window_bounds = array<i64: 1, 128>}, {pipeline_mode = #tpu.pipeline_mode<synchronous>, transform_indices = @transform_5, window_bounds = array<i64: 128, 128>}, {pipeline_mode = #tpu.pipeline_mode<synchronous>, transform_indices = @transform_6, window_bounds = array<i64: 1, 128>}, {transform_indices = @transform_7, window_bounds = array<i64: 8, 128>}]} {
    %c0 = arith.constant 0 : index
    %c0_0 = arith.constant 0 : index
    %0 = vector.load %arg1[%c0, %c0_0] : memref<8x16xf32, #tpu.memory_space<vmem>>, vector<8x16xf32>
    %c0_1 = arith.constant 0 : index
    %c0_2 = arith.constant 0 : index
    %1 = vector.load %arg2[%c0_1, %c0_2] : memref<16x128xf32, #tpu.memory_space<vmem>>, vector<16x128xf32>
    %cst = arith.constant dense<0.000000e+00> : vector<8x128xf32>
    %2 = tpu.matmul %0, %1, %cst {dimension_numbers = #tpu.dot_dimension_numbers<[1], [0], [0], [1], [0, 0, 1, 1], [], []>} : vector<8x16xf32>, vector<16x128xf32>, vector<8x128xf32> -> vector<8x128xf32>
    %c0_3 = arith.constant 0 : index
    %c0_4 = arith.constant 0 : index
    %3 = vector.load %arg3[%c0_3, %c0_4] : memref<1x128xf32, #tpu.memory_space<vmem>>, vector<1x128xf32>
    %4 = vector.broadcast %3 : vector<1x128xf32> to vector<8x128xf32>
    %5 = arith.addf %2, %4 : vector<8x128xf32>
    %cst_5 = arith.constant 0.000000e+00 : f32
    %6 = vector.broadcast %cst_5 : f32 to vector<8x128xf32>
    %7 = arith.maximumf %5, %6 : vector<8x128xf32>
    %c0_6 = arith.constant 0 : index
    %c0_7 = arith.constant 0 : index
    %8 = vector.load %arg4[%c0_6, %c0_7] : memref<128x128xf32, #tpu.memory_space<vmem>>, vector<128x128xf32>
    %cst_8 = arith.constant dense<0.000000e+00> : vector<8x128xf32>
    %9 = tpu.matmul %7, %8, %cst_8 {dimension_numbers = #tpu.dot_dimension_numbers<[1], [0], [0], [1], [0, 0, 1, 1], [], []>} : vector<8x128xf32>, vector<128x128xf32>, vector<8x128xf32> -> vector<8x128xf32>
    %c0_9 = arith.constant 0 : index
    %c0_10 = arith.constant 0 : index
    %10 = vector.load %arg5[%c0_9, %c0_10] : memref<1x128xf32, #tpu.memory_space<vmem>>, vector<1x128xf32>
    %11 = vector.broadcast %10 : vector<1x128xf32> to vector<8x128xf32>
    %12 = arith.addf %9, %11 : vector<8x128xf32>
    %cst_11 = arith.constant 0.000000e+00 : f32
    %13 = vector.broadcast %cst_11 : f32 to vector<8x128xf32>
    %14 = arith.maximumf %12, %13 : vector<8x128xf32>
    %c0_12 = arith.constant 0 : index
    %c0_13 = arith.constant 0 : index
    %15 = vector.load %arg6[%c0_12, %c0_13] : memref<128x128xf32, #tpu.memory_space<vmem>>, vector<128x128xf32>
    %cst_14 = arith.constant dense<0.000000e+00> : vector<8x128xf32>
    %16 = tpu.matmul %14, %15, %cst_14 {dimension_numbers = #tpu.dot_dimension_numbers<[1], [0], [0], [1], [0, 0, 1, 1], [], []>} : vector<8x128xf32>, vector<128x128xf32>, vector<8x128xf32> -> vector<8x128xf32>
    %c0_15 = arith.constant 0 : index
    %c0_16 = arith.constant 0 : index
    %17 = vector.load %arg7[%c0_15, %c0_16] : memref<1x128xf32, #tpu.memory_space<vmem>>, vector<1x128xf32>
    %18 = vector.broadcast %17 : vector<1x128xf32> to vector<8x128xf32>
    %19 = arith.addf %16, %18 : vector<8x128xf32>
    %20 = math.tanh %19 : vector<8x128xf32>
    %c0_17 = arith.constant 0 : index
    %c0_18 = arith.constant 0 : index
    %21 = vector.load %arg8[%c0_17, %c0_18] : memref<8x128xf32, #tpu.memory_space<vmem>>, vector<8x128xf32>
    tpu.vector_store %arg8[%c0_17, %c0_18], %20 {strides = array<i32>} : memref<8x128xf32, #tpu.memory_space<vmem>>, vector<8x128xf32>,
    return
  }
  func.func @transform_0(%arg0: i32) -> (i32, i32) {
    %c0_i32 = arith.constant 0 : i32
    %c0_i32_0 = arith.constant 0 : i32
    return %arg0, %c0_i32 : i32, i32
  }
  func.func @transform_1(%arg0: i32) -> (i32, i32) {
    %c0_i32 = arith.constant 0 : i32
    %c0_i32_0 = arith.constant 0 : i32
    %c0_i32_1 = arith.constant 0 : i32
    return %c0_i32, %c0_i32_0 : i32, i32
  }
  func.func @transform_2(%arg0: i32) -> (i32, i32) {
    %c0_i32 = arith.constant 0 : i32
    %c0_i32_0 = arith.constant 0 : i32
    %c0_i32_1 = arith.constant 0 : i32
    return %c0_i32, %c0_i32_0 : i32, i32
  }
  func.func @transform_3(%arg0: i32) -> (i32, i32) {
    %c0_i32 = arith.constant 0 : i32
    %c0_i32_0 = arith.constant 0 : i32
    %c0_i32_1 = arith.constant 0 : i32
    return %c0_i32, %c0_i32_0 : i32, i32
  }
  func.func @transform_4(%arg0: i32) -> (i32, i32) {
    %c0_i32 = arith.constant 0 : i32
    %c0_i32_0 = arith.constant 0 : i32
    %c0_i32_1 = arith.constant 0 : i32
    return %c0_i32, %c0_i32_0 : i32, i32
  }
  func.func @transform_5(%arg0: i32) -> (i32, i32) {
    %c0_i32 = arith.constant 0 : i32
    %c0_i32_0 = arith.constant 0 : i32
    %c0_i32_1 = arith.constant 0 : i32
    return %c0_i32, %c0_i32_0 : i32, i32
  }
  func.func @transform_6(%arg0: i32) -> (i32, i32) {
    %c0_i32 = arith.constant 0 : i32
    %c0_i32_0 = arith.constant 0 : i32
    %c0_i32_1 = arith.constant 0 : i32
    return %c0_i32, %c0_i32_0 : i32, i32
  }
  func.func @transform_7(%arg0: i32) -> (i32, i32) {
    %c0_i32 = arith.constant 0 : i32
    %c0_i32_0 = arith.constant 0 : i32
    return %arg0, %c0_i32 : i32, i32
  }
}

</mosaic_0001>

<llo_original>
// kernel: double_policy_net_forward.1
$region0: #{double_policy_net_forward.1}
  #allocation0 [shape = 'u32[]', space=smem, size = 0x4, offset = 0x4, fixed_abs, tag = 'smem constant byte address 0x4 - core index']
  #allocation1 [shape = 'u32[72,128]{1,0:T(1,128)}', space=vmem, size = 0x9000, scoped, tag = 'internal scratch']
  %s0 = inlined_call_operand.vmem [shape: f32[8,16], index: 0, kind: input, shape index: {}]
  %s1 = inlined_call_operand.vmem [shape: f32[16,128], index: 1, kind: input, shape index: {}]
  %s2 = inlined_call_operand.vmem [shape: f32[1,128], index: 2, kind: input, shape index: {}]
  %s3 = inlined_call_operand.vmem [shape: f32[128,128], index: 3, kind: input, shape index: {}]
  %s4 = inlined_call_operand.vmem [shape: f32[1,128], index: 4, kind: input, shape index: {}]
  %s5 = inlined_call_operand.vmem [shape: f32[128,128], index: 5, kind: input, shape index: {}]
  %s6 = inlined_call_operand.vmem [shape: f32[1,128], index: 6, kind: input, shape index: {}]
  %s7 = inlined_call_operand.vmem [shape: f32[8,128], index: 7, kind: output, shape index: {}]
  %s8 = sld [smem:[#allocation0]]
  $region38: #{double_policy_net_forward.1} parent=0
    _
  %s10 = ssub.s32 1, %s8
  %s11 = scalar_select 0, %s10, %s8
  // Predicated region
  $region2: #{double_policy_net_forward.1} parent=0 // pred_check
    _
  $region3: #{double_policy_net_forward.1} parent=0 // pred_check_branch
    %13 = sbr.rel (0) target = $region5
  $region4: #{double_policy_net_forward.1} parent=0 // pred_region
    _
  $region5: #{double_policy_net_forward.1} parent=0 // pred_fallthru
    _
  // Predicated region
  $region6: #{double_policy_net_forward.1} parent=0 // pred_check
    _
  $region7: #{double_policy_net_forward.1} parent=0 // pred_check_branch
    %15 = sbr.rel (0) target = $region9
  $region8: #{double_policy_net_forward.1} parent=0 // pred_region
    _
  $region9: #{double_policy_net_forward.1} parent=0 // pred_fallthru
    _
  // Predicated region
  $region10: #{double_policy_net_forward.1} parent=0 // pred_check
    _
  $region11: #{double_policy_net_forward.1} parent=0 // pred_check_branch
    %17 = sbr.rel (0) target = $region13
  $region12: #{double_policy_net_forward.1} parent=0 // pred_region
    _
  $region13: #{double_policy_net_forward.1} parent=0 // pred_fallthru
    _
  // Predicated region
  $region14: #{double_policy_net_forward.1} parent=0 // pred_check
    _
  $region15: #{double_policy_net_forward.1} parent=0 // pred_check_branch
    %19 = sbr.rel (0) target = $region17
  $region16: #{double_policy_net_forward.1} parent=0 // pred_region
    _
  $region17: #{double_policy_net_forward.1} parent=0 // pred_fallthru
    _
  // Predicated region
  $region18: #{double_policy_net_forward.1} parent=0 // pred_check
    _
  $region19: #{double_policy_net_forward.1} parent=0 // pred_check_branch
    %21 = sbr.rel (0) target = $region21
  $region20: #{double_policy_net_forward.1} parent=0 // pred_region
    _
  $region21: #{double_policy_net_forward.1} parent=0 // pred_fallthru
    _
  // Predicated region
  $region22: #{double_policy_net_forward.1} parent=0 // pred_check
    _
  $region23: #{double_policy_net_forward.1} parent=0 // pred_check_branch
    %23 = sbr.rel (0) target = $region25
  $region24: #{double_policy_net_forward.1} parent=0 // pred_region
    _
  $region25: #{double_policy_net_forward.1} parent=0 // pred_fallthru
    _
  // Predicated region
  $region26: #{double_policy_net_forward.1} parent=0 // pred_check
    _
  $region27: #{double_policy_net_forward.1} parent=0 // pred_check_branch
    %25 = sbr.rel (0) target = $region29
  $region28: #{double_policy_net_forward.1} parent=0 // pred_region
    _
  $region29: #{double_policy_net_forward.1} parent=0 // pred_fallthru
    _
  %v26 = vld [vmem:[%s0] sm:$0xff]
  %v27 = vld [vmem:[%s1] sm:$0xff]
  %v28 = vld [vmem:[%s1 + $0x8] sm:$0xff]
  %v29 = vld [vmem:[%s2] sm:$0x1]
  %v31 = vperm.slane %v29, 0
  %vm33 = vcmask 130048
  %v35 = vsel %vm33, %v26, 0
  %37 = vmatpush.msra.mxu0 0.0
  %38 = vmatpush.msra.mxu0 0.0
  %39 = vmatpush.msra.mxu0 0.0
  %40 = vmatpush.msra.mxu0 0.0
  %41 = vmatpush.msra.mxu0 0.0
  %42 = vmatpush.msra.mxu0 0.0
  %43 = vmatpush.msra.mxu0 0.0
  %44 = vmatpush.msra.mxu0 0.0
  %45 = vmatpush.msra.mxu0 0.0
  %46 = vmatpush.msra.mxu0 0.0
  %47 = vmatpush.msra.mxu0 0.0
  %48 = vmatpush.msra.mxu0 0.0
  %49 = vmatpush.msra.mxu0 0.0
  %50 = vmatpush.msra.mxu0 0.0
  %51 = vmatpush.msra.mxu0 %v28
  %52 = vmatpush.msra.mxu0 %v27
  %53 = vmatmul.f32.gmra.mxu0 %v35
  %v54 = vpop.f32.mrf.mxu0
  %v55 = vadd.f32 %v31, %v54
  %56 = vdwg.mxu0
  %v57 = vmax.f32 %v55, 0.0
  %v58 = vld [vmem:[%s3] sm:$0xff]
  %v59 = vld [vmem:[%s3 + $0x8] sm:$0xff]
  %v60 = vld [vmem:[%s3 + $0x10] sm:$0xff]
  %v61 = vld [vmem:[%s3 + $0x18] sm:$0xff]
  %v62 = vld [vmem:[%s3 + $0x20] sm:$0xff]
  %v63 = vld [vmem:[%s3 + $0x28] sm:$0xff]
  %v64 = vld [vmem:[%s3 + $0x30] sm:$0xff]
  %v65 = vld [vmem:[%s3 + $0x38] sm:$0xff]
  %v66 = vld [vmem:[%s3 + $0x40] sm:$0xff]
  %v67 = vld [vmem:[%s3 + $0x48] sm:$0xff]
  %v68 = vld [vmem:[%s3 + $0x50] sm:$0xff]
  %v69 = vld [vmem:[%s3 + $0x58] sm:$0xff]
  %v70 = vld [vmem:[%s3 + $0x60] sm:$0xff]
  %v71 = vld [vmem:[%s3 + $0x68] sm:$0xff]
  %v72 = vld [vmem:[%s3 + $0x70] sm:$0xff]
  %v73 = vld [vmem:[%s3 + $0x78] sm:$0xff]
  %v74 = vld [vmem:[%s4] sm:$0x1]
  %v76 = vperm.slane %v74, 0
  %78 = vmatpush.msra.mxu0 %v73
  %79 = vmatpush.msra.mxu0 %v72
  %80 = vmatpush.msra.mxu0 %v71
  %81 = vmatpush.msra.mxu0 %v70
  %82 = vmatpush.msra.mxu0 %v69
  %83 = vmatpush.msra.mxu0 %v68
  %84 = vmatpush.msra.mxu0 %v67
  %85 = vmatpush.msra.mxu0 %v66
  %86 = vmatpush.msra.mxu0 %v65
  %87 = vmatpush.msra.mxu0 %v64
  %88 = vmatpush.msra.mxu0 %v63
  %89 = vmatpush.msra.mxu0 %v62
  %90 = vmatpush.msra.mxu0 %v61
  %91 = vmatpush.msra.mxu0 %v60
  %92 = vmatpush.msra.mxu0 %v59
  %93 = vmatpush.msra.mxu0 %v58
  %94 = vmatmul.f32.gmra.mxu0 %v57
  %v95 = vpop.f32.mrf.mxu0
  %v96 = vadd.f32 %v76, %v95
  %97 = vdwg.mxu0
  %v98 = vmax.f32 %v96, 0.0
  %v99 = vld [vmem:[%s5] sm:$0xff]
  %v100 = vld [vmem:[%s5 + $0x8] sm:$0xff]
  %v101 = vld [vmem:[%s5 + $0x10] sm:$0xff]
  %v102 = vld [vmem:[%s5 + $0x18] sm:$0xff]
  %v103 = vld [vmem:[%s5 + $0x20] sm:$0xff]
  %v104 = vld [vmem:[%s5 + $0x28] sm:$0xff]
  %v105 = vld [vmem:[%s5 + $0x30] sm:$0xff]
  %v106 = vld [vmem:[%s5 + $0x38] sm:$0xff]
  %v107 = vld [vmem:[%s5 + $0x40] sm:$0xff]
  %v108 = vld [vmem:[%s5 + $0x48] sm:$0xff]
  %v109 = vld [vmem:[%s5 + $0x50] sm:$0xff]
  %v110 = vld [vmem:[%s5 + $0x58] sm:$0xff]
  %v111 = vld [vmem:[%s5 + $0x60] sm:$0xff]
  %v112 = vld [vmem:[%s5 + $0x68] sm:$0xff]
  %v113 = vld [vmem:[%s5 + $0x70] sm:$0xff]
  %v114 = vld [vmem:[%s5 + $0x78] sm:$0xff]
  %v115 = vld [vmem:[%s6] sm:$0x1]
  %v117 = vperm.slane %v115, 0
  %119 = vmatpush.msra.mxu0 %v114
  %120 = vmatpush.msra.mxu0 %v113
  %121 = vmatpush.msra.mxu0 %v112
  %122 = vmatpush.msra.mxu0 %v111
  %123 = vmatpush.msra.mxu0 %v110
  %124 = vmatpush.msra.mxu0 %v109
  %125 = vmatpush.msra.mxu0 %v108
  %126 = vmatpush.msra.mxu0 %v107
  %127 = vmatpush.msra.mxu0 %v106
  %128 = vmatpush.msra.mxu0 %v105
  %129 = vmatpush.msra.mxu0 %v104
  %130 = vmatpush.msra.mxu0 %v103
  %131 = vmatpush.msra.mxu0 %v102
  %132 = vmatpush.msra.mxu0 %v101
  %133 = vmatpush.msra.mxu0 %v100
  %134 = vmatpush.msra.mxu0 %v99
  %135 = vmatmul.f32.gmra.mxu0 %v98
  %v136 = vpop.f32.mrf.mxu0
  %v137 = vadd.f32 %v117, %v136
  %138 = vdwg.mxu0
  %v139 = vtanh.pop %v137
  %140 = vst [vmem:[%s7] sm:$0xff] %v139
  // Predicated region
  $region30: #{double_policy_net_forward.1} parent=0 // pred_check
    _
  $region31: #{double_policy_net_forward.1} parent=0 // pred_check_branch
    %142 = sbr.rel (0) target = $region33
  $region32: #{double_policy_net_forward.1} parent=0 // pred_region
    _
  $region33: #{double_policy_net_forward.1} parent=0 // pred_fallthru
    _
  // Predicated region
  $region34: #{double_policy_net_forward.1} parent=0 // pred_check
    _
  $region35: #{double_policy_net_forward.1} parent=0 // pred_check_branch
    %144 = sbr.rel (0) target = $region37
  $region36: #{double_policy_net_forward.1} parent=0 // pred_region
    _
  $region37: #{double_policy_net_forward.1} parent=0 // pred_fallthru
    _

</llo_original>
